<compile_context>
chip_gen: v7x
topology: tpu7x:2x2x1
jax: 0.10.0
libtpu: 0.0.40
codegen_flags: <defaults>
</compile_context>

<pallas_src>
import math

import jax
import jax.numpy as jnp
from jax.experimental import pallas as pl
from jax.experimental.pallas import tpu as pltpu


_LANE = 128
_SUBLANE = 8
_TARGET_BLOCK_BYTES = 2 * 1024 * 1024  # ~2 MiB per x/out block


def _pos_enc_kernel(x_ref, pe_ref, o_ref):
    # x_ref / o_ref: (tile_b, tile_f); pe_ref: (1, tile_f)
    # Broadcast add of the positional row over the (sublane) batch axis.
    o_ref[...] = x_ref[...] + pe_ref[...]


def make_pe_table(d_model: int, max_len: int, dtype=jnp.float32) -> jnp.ndarray:
    """Builds the (max_len, 1, d_model) positional-encoding buffer like the module."""
    position = jnp.arange(max_len, dtype=jnp.float32)[:, None]                # (L, 1)
    div_term = jnp.exp(
        jnp.arange(0, d_model, 2, dtype=jnp.float32)
        * (-math.log(10000.0) / d_model)
    )                                                                          # (D/2,)
    pe = jnp.zeros((max_len, 1, d_model), dtype=jnp.float32)
    pe = pe.at[:, 0, 0::2].set(jnp.sin(position * div_term))
    pe = pe.at[:, 0, 1::2].set(jnp.cos(position * div_term))
    return pe.astype(dtype)


def _pick_tiles(B: int, SD: int, itemsize: int):
    """Pick (tile_b, tile_f) obeying the (8, 128) rule with ~2 MiB blocks."""
    # Feature (lane) tile: multiple of 128; full extent if SD is not lane-aligned
    # (a block equal to the full dim is always legal).
    if SD % _LANE == 0:
        max_f = max(_LANE, (_TARGET_BLOCK_BYTES // (_SUBLANE * itemsize)) // _LANE * _LANE)
        tile_f = min(SD, max_f)
    else:
        tile_f = SD
    # Batch (sublane) tile: full extent if it fits the budget, else multiple of 8.
    rows_budget = max(1, _TARGET_BLOCK_BYTES // (tile_f * itemsize))
    if B <= rows_budget:
        tile_b = B
    else:
        tile_b = max(_SUBLANE, (rows_budget // _SUBLANE) * _SUBLANE)
    return tile_b, tile_f


def positional_encoding_forward(embedding: jnp.ndarray, pe: jnp.ndarray,
                                *, tile_b=None, tile_f=None) -> jnp.ndarray:
    """embedding: (B, S, D); pe: (max_len, 1, D).  Returns (B, S, D)."""
    B, S, D = embedding.shape
    assert S <= pe.shape[0], "sequence longer than max_len"
    SD = S * D
    dtype = embedding.dtype
    itemsize = jnp.dtype(dtype).itemsize

    # Lane-dense flattening: last axis S*D (>= 128-wide for module shapes).
    x_flat = embedding.reshape(B, SD)
    pe_row = pe[:S, 0, :].reshape(1, SD).astype(dtype)  # cast once, wrapper-side

    tb, tf = _pick_tiles(B, SD, itemsize)
    if tile_b is not None:
        tb = tile_b
    if tile_f is not None:
        tf = tile_f

    grid = (pl.cdiv(B, tb), pl.cdiv(SD, tf))

    out_flat = pl.pallas_call(
        _pos_enc_kernel,
        out_shape=jax.ShapeDtypeStruct((B, SD), dtype),
        grid_spec=pltpu.PrefetchScalarGridSpec(
            num_scalar_prefetch=0,
            grid=grid,
            in_specs=[
                pl.BlockSpec((tb, tf), lambda b, f: (b, f)),
                # pe block index independent of the batch axis -> tile reused
                # across batch iterations by the pipeline.
                pl.BlockSpec((1, tf), lambda b, f: (0, f)),
            ],
            out_specs=pl.BlockSpec((tb, tf), lambda b, f: (b, f)),
        ),
        compiler_params=pltpu.CompilerParams(
            dimension_semantics=("parallel", "parallel"),
            vmem_limit_bytes=32 * 1024 * 1024,
        ),
    )(x_flat, pe_row)

    return out_flat.reshape(B, S, D)


if __name__ == "__main__":
    def ref_forward(x, pe):
        # Mirrors the PyTorch permute/add/permute path (eval mode).
        S = x.shape[1]
        return jnp.transpose(jnp.transpose(x, (1, 0, 2)) + pe[:S], (1, 0, 2))

    key = jax.random.PRNGKey(0)

    # Small shapes consistent with the module (default d_model=128, max_len=15,
    # plus a tiny d_model=32 config); some cases force multi-tile grids to
    # exercise the pipelined / megacore path.
    cases = [
        # (B,  S,  D,   max_len, tile_b, tile_f)
        (2,  8,  32,  15, None, None),   # single block
        (2,  8,  32,  15, None, 128),    # grid (1, 2): tiled feature axis
        (16, 8,  32,  15, 8,    128),    # grid (2, 2): tiled batch + feature
        (4,  15, 128, 15, None, None),   # module defaults d_model=128, max_len=15
    ]

    ok = True
    for i, (B, S, D, L, tb, tf) in enumerate(cases):
        k = jax.random.fold_in(key, i)
        x = jax.random.normal(k, (B, S, D), dtype=jnp.float32)
        pe = make_pe_table(d_model=D, max_len=L, dtype=jnp.float32)

        out = jax.block_until_ready(
            positional_encoding_forward(x, pe, tile_b=tb, tile_f=tf)
        )
        ref = ref_forward(x, pe)
        if not jnp.allclose(out, ref, atol=1e-6):
            ok = False
            print(f"mismatch in case {i}: max err {float(jnp.abs(out - ref).max())}")

    if ok:
        print("KERNEL_OK")
</pallas_src>

<mosaic_0001>
module attributes {stable_mosaic.version = 11 : i64} {
  func.func @_pos_enc_kernel(%arg0: i32, %arg1: i32, %arg2: memref<2x256xf32, #tpu.memory_space<vmem>>, %arg3: memref<1x256xf32, #tpu.memory_space<vmem>>, %arg4: memref<2x256xf32, #tpu.memory_space<vmem>>) attributes {dimension_semantics = [#tpu.dimension_semantics<parallel>, #tpu.dimension_semantics<parallel>], iteration_bounds = array<i64: 1, 1>, scalar_prefetch = 0 : i64, scratch_operands = 0 : i64, tpu.core_type = #tpu.core_type<tc>, window_params = [{transform_indices = @transform_0, window_bounds = array<i64: 2, 256>}, {transform_indices = @transform_1, window_bounds = array<i64: 1, 256>}, {transform_indices = @transform_2, window_bounds = array<i64: 2, 256>}]} {
    %c0 = arith.constant 0 : index
    %c0_0 = arith.constant 0 : index
    %0 = vector.load %arg2[%c0, %c0_0] : memref<2x256xf32, #tpu.memory_space<vmem>>, vector<2x256xf32>
    %c0_1 = arith.constant 0 : index
    %c0_2 = arith.constant 0 : index
    %1 = vector.load %arg3[%c0_1, %c0_2] : memref<1x256xf32, #tpu.memory_space<vmem>>, vector<1x256xf32>
    %2 = vector.broadcast %1 : vector<1x256xf32> to vector<2x256xf32>
    %3 = arith.addf %0, %2 : vector<2x256xf32>
    %c0_3 = arith.constant 0 : index
    %c0_4 = arith.constant 0 : index
    %4 = vector.load %arg4[%c0_3, %c0_4] : memref<2x256xf32, #tpu.memory_space<vmem>>, vector<2x256xf32>
    tpu.vector_store %arg4[%c0_3, %c0_4], %3 {strides = array<i32>} : memref<2x256xf32, #tpu.memory_space<vmem>>, vector<2x256xf32>,
    return
  }
  func.func @transform_0(%arg0: i32, %arg1: i32) -> (i32, i32) {
    %c0_i32 = arith.constant 0 : i32
    return %arg0, %arg1 : i32, i32
  }
  func.func @transform_1(%arg0: i32, %arg1: i32) -> (i32, i32) {
    %c0_i32 = arith.constant 0 : i32
    %c0_i32_0 = arith.constant 0 : i32
    return %c0_i32, %arg1 : i32, i32
  }
  func.func @transform_2(%arg0: i32, %arg1: i32) -> (i32, i32) {
    %c0_i32 = arith.constant 0 : i32
    return %arg0, %arg1 : i32, i32
  }
}

</mosaic_0001>

<llo_original>
// kernel: tpu_custom_call.1
$region0: #{tpu_custom_call.1}
  #allocation0 [shape = 'u32[]', space=smem, size = 0x4, offset = 0x4, fixed_abs, tag = 'smem constant byte address 0x4 - core index']
  #allocation1 [shape = 'u32[144,128]{1,0:T(1,128)}', space=vmem, size = 0x12000, scoped, tag = 'internal scratch']
  %s0 = inlined_call_operand.hbm [shape: f32[2,256], index: 0, kind: input, shape index: {}]
  %s1 = inlined_call_operand.vmem [shape: f32[1,256], index: 1, kind: input, shape index: {}]
  %s2 = inlined_call_operand.hbm [shape: f32[2,256], index: 2, kind: output, shape index: {}]
  %s3 = sld [smem:[#allocation0]]
  $region22: #{tpu_custom_call.1} parent=0
    _
  %s5 = ssub.s32 1, %s3
  %s6 = scalar_select 0, %s5, %s3
  $region1: #{tpu_custom_call.1} parent=0
    #allocation2 [shape = 'u8[2048]{0}', space=vmem, size = 0x800, scoped, tag = 'input window, operand 0, single buffered']
    #allocation3 [shape = 's32[1]{0}', space=sflag, size = 0x4, scoped, tag = 'scoped memory for tpu_custom_call.1']
    #allocation4 [shape = 's32[1]{0}', space=sflag, size = 0x4, scoped, tag = 'scoped memory for tpu_custom_call.1']
    #allocation5 [shape = 'u8[2048]{0}', space=vmem, size = 0x800, scoped, tag = 'output window, operand 0, single buffered']
    %7 = vsyncpa [#allocation3], 0
    %8 = vsyncpa [#allocation4], 0
    // Predicated region
    $region2: #{tpu_custom_call.1} parent=1 // pred_check
      _
    $region3: #{tpu_custom_call.1} parent=1 // pred_check_branch
      %10 = sbr.rel (0) target = $region5
    $region4: #{tpu_custom_call.1} parent=1 // pred_region
      %s12 = ssub.s32 64, 64
      %13 = vsyncadd [#allocation3], %s12
      %s15 = sshll.u32 [#allocation2], 4
      %s16 = int_to_ptr.vmem [resolvable:$true] %s15
      %18 = dma.hbm_to_vmem [thread:$0]  %s0, 64, %s16, [#allocation3]
    $region5: #{tpu_custom_call.1} parent=1 // pred_fallthru
      _
    // Predicated region
    $region6: #{tpu_custom_call.1} parent=1 // pred_check
      _
    $region7: #{tpu_custom_call.1} parent=1 // pred_check_branch
      %20 = sbr.rel (0) target = $region9
    $region8: #{tpu_custom_call.1} parent=1 // pred_region
      _
    $region9: #{tpu_custom_call.1} parent=1 // pred_fallthru
      _
    // Predicated region
    $region10: #{tpu_custom_call.1} parent=1 // pred_check
      _
    $region11: #{tpu_custom_call.1} parent=1 // pred_check_branch
      %22 = sbr.rel (0) target = $region13
    $region12: #{tpu_custom_call.1} parent=1 // pred_region
      %23 = dma.done [#allocation3], 64
    $region13: #{tpu_custom_call.1} parent=1 // pred_fallthru
      _
    %v24 = vld [vmem:[#allocation2] sm:$0xf]
    %v25 = vld [vmem:[%s1] sm:$0x3]
    %v27 = vlaneseq
    %v28 = vshrl.u32 %v27, 7
    %v29 = vsub.s32 0, %v28
    %v30 = vrot.slane %v25, %v29
    %v31 = vlaneseq
    %v32 = vshrl.u32 %v31, 7
    %v33 = vsub.s32 1, %v32
    %v34 = vrot.slane %v25, %v33
    %v35 = vcombine.low %v30, %v34
    %v37 = vunpack.c.l.s4 1983009808
    %v38 = vunpack.c.0.s8 %v37
    %v39 = vlaneseq
    %v40 = vshrl.u32 %v39, 7
    %v41 = vsub.s32 %v38, %v40
    %v42 = vrot.slane %v35, %v41
    %v44 = vadd.f32 %v24, %v42
    %45 = vst [vmem:[#allocation5] sm:$0xf] %v44
    // Predicated region
    $region14: #{tpu_custom_call.1} parent=1 // pred_check
      _
    $region15: #{tpu_custom_call.1} parent=1 // pred_check_branch
      %47 = sbr.rel (0) target = $region17
    $region16: #{tpu_custom_call.1} parent=1 // pred_region
      %s49 = ssub.s32 64, 64
      %50 = vsyncadd [#allocation4], %s49
      %s52 = sshll.u32 [#allocation5], 4
      %s53 = int_to_ptr.vmem [resolvable:$true] %s52
      %55 = dma.vmem_to_hbm [thread:$0]  %s53, 64, %s2, [#allocation4]
    $region17: #{tpu_custom_call.1} parent=1 // pred_fallthru
      _
    // Predicated region
    $region18: #{tpu_custom_call.1} parent=1 // pred_check
      _
    $region19: #{tpu_custom_call.1} parent=1 // pred_check_branch
      %57 = sbr.rel (0) target = $region21
    $region20: #{tpu_custom_call.1} parent=1 // pred_region
      %58 = dma.done [#allocation4], 64
    $region21: #{tpu_custom_call.1} parent=1 // pred_fallthru
      _
    %59 = vsyncpa [#allocation3], 1
    %60 = vsyncpa [#allocation4], 1

</llo_original>
